<compile_context>
chip_gen: v6e
topology: v6e:2x2x1
jax: 0.10.0
libtpu: 0.0.40
codegen_flags: <defaults>
</compile_context>

<pallas_src>
import jax
import jax.numpy as jnp
from jax.experimental import pallas as pl
from jax.experimental.pallas import tpu as pltpu


def mlp_kernel(x_ref, w1_ref, w2_ref, out_ref):
    # fc1 (no bias) -> tanh -> fc2 (no bias) -> softmax over the last axis.
    x = x_ref[...]                                                  # (TB, D_in)

    # MXU matmuls in the native input dtype, f32 accumulation.
    h = jnp.dot(x, w1_ref[...], preferred_element_type=jnp.float32)  # (TB, H)
    h = jnp.tanh(h)                                                   # EUP
    logits = jnp.dot(h, w2_ref[...],
                     preferred_element_type=jnp.float32)              # (TB, D_out)

    # Numerically-stable softmax along the last axis (exact normalization).
    m = jnp.max(logits, axis=-1, keepdims=True)
    e = jnp.exp(logits - m)
    denom = jnp.sum(e, axis=-1, keepdims=True)
    out_ref[...] = (e / denom).astype(out_ref.dtype)


def _round_up(v, m):
    return ((v + m - 1) // m) * m


def classic_mlp(x, w1, w2, *, tb=None):
    """x: (B, D_in); w1: (D_in, H); w2: (H, D_out).

    Returns softmax(tanh(x @ w1) @ w2, axis=1) with shape (B, D_out).
    """
    B, D_in = x.shape
    H, D_out = w2.shape
    assert w1.shape == (D_in, H)

    # Batch tile: large by default (amortize per-step pipeline overhead), but
    # capped so a big batch still yields >=2 grid steps for v7x's 2 TensorCores.
    if tb is None:
        tb = min(B, 2048)
        if B >= 16:
            tb = min(tb, _round_up(pl.cdiv(B, 2), 8))
    tb = max(1, min(int(tb), B))
    if tb != B and tb % 8 != 0:
        # Block sublane dim must be a multiple of 8 unless it equals the full dim.
        tb = min(_round_up(tb, 8), B)
        if tb != B and tb % 8 != 0:
            tb = B

    grid = (pl.cdiv(B, tb),)

    out = pl.pallas_call(
        mlp_kernel,
        out_shape=jax.ShapeDtypeStruct((B, D_out), x.dtype),
        grid=grid,
        in_specs=[
            pl.BlockSpec((tb, D_in), lambda i: (i, 0)),   # x: tiled over batch
            pl.BlockSpec((D_in, H), lambda i: (0, 0)),    # w1: resident in VMEM
            pl.BlockSpec((H, D_out), lambda i: (0, 0)),   # w2: resident in VMEM
        ],
        out_specs=pl.BlockSpec((tb, D_out), lambda i: (i, 0)),
        compiler_params=pltpu.CompilerParams(
            dimension_semantics=("parallel",),            # shard batch across TCs
        ),
    )(x, w1, w2)

    return out


def reference_mlp(x, w1, w2):
    hp = jax.lax.Precision.HIGHEST
    h = jnp.tanh(jnp.dot(x, w1, precision=hp))
    logits = jnp.dot(h, w2, precision=hp)
    return jax.nn.softmax(logits, axis=1)


if __name__ == "__main__":
    # Small shapes consistent with the module: input_size from the (scaled)
    # feature matrix, hidden_size=32, output_size = number of one-hot classes.
    batch = 8
    input_size = 16
    hidden_size = 32
    output_size = 4

    key = jax.random.PRNGKey(0)
    kx, k1, k2 = jax.random.split(key, 3)

    x = jax.random.normal(kx, (batch, input_size), dtype=jnp.float32)
    # nn.init.uniform_(w, a=-1.0, b=1.0); stored as (in, out) = weight.T
    w1 = jax.random.uniform(k1, (input_size, hidden_size),
                            minval=-1.0, maxval=1.0, dtype=jnp.float32)
    w2 = jax.random.uniform(k2, (hidden_size, output_size),
                            minval=-1.0, maxval=1.0, dtype=jnp.float32)

    out = classic_mlp(x, w1, w2)
    jax.block_until_ready(out)

    ref = reference_mlp(x, w1, w2)
    assert out.shape == (batch, output_size)
    assert jnp.allclose(out, ref, atol=1e-3, rtol=1e-3), (out, ref)
    # Exact divide in the kernel -> rows of the softmax sum to 1 to f32 precision.
    assert jnp.allclose(jnp.sum(out, axis=1), jnp.ones((batch,)), atol=1e-5)

    print("KERNEL_OK")
</pallas_src>

<mosaic_0001>
module attributes {stable_mosaic.version = 11 : i64} {
  func.func @mlp_kernel(%arg0: i32, %arg1: memref<8x16xf32, #tpu.memory_space<vmem>>, %arg2: memref<16x32xf32, #tpu.memory_space<vmem>>, %arg3: memref<32x4xf32, #tpu.memory_space<vmem>>, %arg4: memref<8x4xf32, #tpu.memory_space<vmem>>) attributes {dimension_semantics = [#tpu.dimension_semantics<parallel>], iteration_bounds = array<i64: 1>, scalar_prefetch = 0 : i64, scratch_operands = 0 : i64, tpu.core_type = #tpu.core_type<tc>, window_params = [{transform_indices = @transform_0, window_bounds = array<i64: 8, 16>}, {pipeline_mode = #tpu.pipeline_mode<synchronous>, transform_indices = @transform_1, window_bounds = array<i64: 16, 32>}, {pipeline_mode = #tpu.pipeline_mode<synchronous>, transform_indices = @transform_2, window_bounds = array<i64: 32, 4>}, {transform_indices = @transform_3, window_bounds = array<i64: 8, 4>}]} {
    %c0 = arith.constant 0 : index
    %c0_0 = arith.constant 0 : index
    %0 = vector.load %arg1[%c0, %c0_0] : memref<8x16xf32, #tpu.memory_space<vmem>>, vector<8x16xf32>
    %c0_1 = arith.constant 0 : index
    %c0_2 = arith.constant 0 : index
    %1 = vector.load %arg2[%c0_1, %c0_2] : memref<16x32xf32, #tpu.memory_space<vmem>>, vector<16x32xf32>
    %cst = arith.constant dense<0.000000e+00> : vector<8x32xf32>
    %2 = tpu.matmul %0, %1, %cst {dimension_numbers = #tpu.dot_dimension_numbers<[1], [0], [0], [1], [0, 0, 1, 1], [], []>} : vector<8x16xf32>, vector<16x32xf32>, vector<8x32xf32> -> vector<8x32xf32>
    %3 = math.tanh %2 : vector<8x32xf32>
    %c0_3 = arith.constant 0 : index
    %c0_4 = arith.constant 0 : index
    %4 = vector.load %arg3[%c0_3, %c0_4] : memref<32x4xf32, #tpu.memory_space<vmem>>, vector<32x4xf32>
    %cst_5 = arith.constant dense<0.000000e+00> : vector<8x4xf32>
    %5 = tpu.matmul %3, %4, %cst_5 {dimension_numbers = #tpu.dot_dimension_numbers<[1], [0], [0], [1], [0, 0, 1, 1], [], []>} : vector<8x32xf32>, vector<32x4xf32>, vector<8x4xf32> -> vector<8x4xf32>
    %cst_6 = arith.constant dense<0xFF800000> : vector<8xf32>
    %6 = vector.multi_reduction <maximumf>, %5, %cst_6 [1] : vector<8x4xf32> to vector<8xf32>
    %7 = vector.shape_cast %6 : vector<8xf32> to vector<8x1xf32>
    %8 = vector.broadcast %7 : vector<8x1xf32> to vector<8x4xf32>
    %9 = arith.subf %5, %8 : vector<8x4xf32>
    %10 = math.exp %9 : vector<8x4xf32>
    %cst_7 = arith.constant dense<0.000000e+00> : vector<8xf32>
    %11 = vector.multi_reduction <add>, %10, %cst_7 [1] : vector<8x4xf32> to vector<8xf32>
    %12 = vector.shape_cast %11 : vector<8xf32> to vector<8x1xf32>
    %13 = vector.broadcast %12 : vector<8x1xf32> to vector<8x4xf32>
    %14 = arith.divf %10, %13 : vector<8x4xf32>
    %c0_8 = arith.constant 0 : index
    %c0_9 = arith.constant 0 : index
    %15 = vector.load %arg4[%c0_8, %c0_9] : memref<8x4xf32, #tpu.memory_space<vmem>>, vector<8x4xf32>
    tpu.vector_store %arg4[%c0_8, %c0_9], %14 {strides = array<i32>} : memref<8x4xf32, #tpu.memory_space<vmem>>, vector<8x4xf32>,
    return
  }
  func.func @transform_0(%arg0: i32) -> (i32, i32) {
    %c0_i32 = arith.constant 0 : i32
    %c0_i32_0 = arith.constant 0 : i32
    return %arg0, %c0_i32 : i32, i32
  }
  func.func @transform_1(%arg0: i32) -> (i32, i32) {
    %c0_i32 = arith.constant 0 : i32
    %c0_i32_0 = arith.constant 0 : i32
    %c0_i32_1 = arith.constant 0 : i32
    return %c0_i32, %c0_i32_0 : i32, i32
  }
  func.func @transform_2(%arg0: i32) -> (i32, i32) {
    %c0_i32 = arith.constant 0 : i32
    %c0_i32_0 = arith.constant 0 : i32
    %c0_i32_1 = arith.constant 0 : i32
    return %c0_i32, %c0_i32_0 : i32, i32
  }
  func.func @transform_3(%arg0: i32) -> (i32, i32) {
    %c0_i32 = arith.constant 0 : i32
    %c0_i32_0 = arith.constant 0 : i32
    return %arg0, %c0_i32 : i32, i32
  }
}

</mosaic_0001>

<llo_original>
// kernel: tpu_custom_call.1
$region0: #{tpu_custom_call.1}
  #allocation0 [shape = 'u32[]', space=smem, size = 0x4, offset = 0x4, fixed_abs, tag = 'smem constant byte address 0x4 - core index']
  #allocation1 [shape = 'u32[144,128]{1,0:T(1,128)}', space=vmem, size = 0x12000, scoped, tag = 'internal scratch']
  %s0 = inlined_call_operand.vmem [shape: f32[8,16], index: 0, kind: input, shape index: {}]
  %s1 = inlined_call_operand.vmem [shape: f32[16,32], index: 1, kind: input, shape index: {}]
  %s2 = inlined_call_operand.vmem [shape: f32[32,4], index: 2, kind: input, shape index: {}]
  %s3 = inlined_call_operand.vmem [shape: f32[8,4], index: 3, kind: output, shape index: {}]
  %s4 = sld [smem:[#allocation0]]
  $region22: #{tpu_custom_call.1} parent=0
    _
  %s6 = ssub.s32 1, %s4
  %s7 = scalar_select 0, %s6, %s4
  // Predicated region
  $region2: #{tpu_custom_call.1} parent=0 // pred_check
    _
  $region3: #{tpu_custom_call.1} parent=0 // pred_check_branch
    %9 = sbr.rel (0) target = $region5
  $region4: #{tpu_custom_call.1} parent=0 // pred_region
    _
  $region5: #{tpu_custom_call.1} parent=0 // pred_fallthru
    _
  // Predicated region
  $region6: #{tpu_custom_call.1} parent=0 // pred_check
    _
  $region7: #{tpu_custom_call.1} parent=0 // pred_check_branch
    %11 = sbr.rel (0) target = $region9
  $region8: #{tpu_custom_call.1} parent=0 // pred_region
    _
  $region9: #{tpu_custom_call.1} parent=0 // pred_fallthru
    _
  // Predicated region
  $region10: #{tpu_custom_call.1} parent=0 // pred_check
    _
  $region11: #{tpu_custom_call.1} parent=0 // pred_check_branch
    %13 = sbr.rel (0) target = $region13
  $region12: #{tpu_custom_call.1} parent=0 // pred_region
    _
  $region13: #{tpu_custom_call.1} parent=0 // pred_fallthru
    _
  %v14 = vld [vmem:[%s0] sm:$0xff]
  %v15 = vld [vmem:[%s1] sm:$0xff]
  %v16 = vld [vmem:[%s1 + $0x8] sm:$0xff]
  %vm17 = vcmask 130048
  %v19 = vsel %vm17, %v14, 0
  %21 = vmatprep.subr.mxu0 0.0
  %22 = vmatpush1.msra.mxu0 0.0
  %23 = vmatprep.subr.mxu0 0.0
  %24 = vmatpush1.msra.mxu0 0.0
  %25 = vmatprep.subr.mxu0 0.0
  %26 = vmatpush1.msra.mxu0 0.0
  %27 = vmatprep.subr.mxu0 0.0
  %28 = vmatpush1.msra.mxu0 0.0
  %29 = vmatprep.subr.mxu0 0.0
  %30 = vmatpush1.msra.mxu0 0.0
  %31 = vmatprep.subr.mxu0 0.0
  %32 = vmatpush1.msra.mxu0 0.0
  %33 = vmatprep.subr.mxu0 0.0
  %34 = vmatpush1.msra.mxu0 0.0
  %35 = vmatprep.subr.mxu0 0.0
  %36 = vmatpush1.msra.mxu0 0.0
  %37 = vmatprep.subr.mxu0 0.0
  %38 = vmatpush1.msra.mxu0 0.0
  %39 = vmatprep.subr.mxu0 0.0
  %40 = vmatpush1.msra.mxu0 0.0
  %41 = vmatprep.subr.mxu0 0.0
  %42 = vmatpush1.msra.mxu0 0.0
  %43 = vmatprep.subr.mxu0 0.0
  %44 = vmatpush1.msra.mxu0 0.0
  %45 = vmatprep.subr.mxu0 0.0
  %46 = vmatpush1.msra.mxu0 0.0
  %47 = vmatprep.subr.mxu0 0.0
  %48 = vmatpush1.msra.mxu0 0.0
  %49 = vmatprep.subr.mxu0 0.0
  %50 = vmatpush1.msra.mxu0 %v16
  %51 = vmatprep.subr.mxu0 0.0
  %52 = vmatpush1.msra.mxu0 %v15
  %53 = vmatprep.subr.mxu0 0.0
  %54 = vmatpush2.msra.mxu0 0.0
  %55 = vmatprep.subr.mxu0 0.0
  %56 = vmatpush2.msra.mxu0 0.0
  %57 = vmatprep.subr.mxu0 0.0
  %58 = vmatpush2.msra.mxu0 0.0
  %59 = vmatprep.subr.mxu0 0.0
  %60 = vmatpush2.msra.mxu0 0.0
  %61 = vmatprep.subr.mxu0 0.0
  %62 = vmatpush2.msra.mxu0 0.0
  %63 = vmatprep.subr.mxu0 0.0
  %64 = vmatpush2.msra.mxu0 0.0
  %65 = vmatprep.subr.mxu0 0.0
  %66 = vmatpush2.msra.mxu0 0.0
  %67 = vmatprep.subr.mxu0 0.0
  %68 = vmatpush2.msra.mxu0 0.0
  %69 = vmatprep.subr.mxu0 0.0
  %70 = vmatpush2.msra.mxu0 0.0
  %71 = vmatprep.subr.mxu0 0.0
  %72 = vmatpush2.msra.mxu0 0.0
  %73 = vmatprep.subr.mxu0 0.0
  %74 = vmatpush2.msra.mxu0 0.0
  %75 = vmatprep.subr.mxu0 0.0
  %76 = vmatpush2.msra.mxu0 0.0
  %77 = vmatprep.subr.mxu0 0.0
  %78 = vmatpush2.msra.mxu0 0.0
  %79 = vmatprep.subr.mxu0 0.0
  %80 = vmatpush2.msra.mxu0 0.0
  %81 = vmatprep.subr.mxu0 0.0
  %82 = vmatpush2.msra.mxu0 0.0
  %83 = vmatprep.subr.mxu0 0.0
  %84 = vmatpush2.msra.mxu0 0.0
  %85 = vmatprep.mubr.f32.mxu0 0.0
  %86 = vmatmul.mubr.f32.gmra.mxu0 %v19
  %v87 = vpop.f32.mrf.mxu0
  %v88 = vadd.f32 0.0, %v87
  %v89 = vpop.f32.mrf.mxu0
  %90 = vdwg.mxu0
  %v91 = vtanh.pop %v88
  %v92 = vld [vmem:[%s2] sm:$0xff]
  %v93 = vld [vmem:[%s2 + $0x8] sm:$0xff]
  %v94 = vld [vmem:[%s2 + $0x10] sm:$0xff]
  %v95 = vld [vmem:[%s2 + $0x18] sm:$0xff]
  %vm96 = vcmask 261120
  %v98 = vsel %vm96, %v91, 0
  %100 = vmatprep.subr.mxu0 0.0
  %101 = vmatpush1.msra.mxu0 0.0
  %102 = vmatprep.subr.mxu0 0.0
  %103 = vmatpush1.msra.mxu0 0.0
  %104 = vmatprep.subr.mxu0 0.0
  %105 = vmatpush1.msra.mxu0 0.0
  %106 = vmatprep.subr.mxu0 0.0
  %107 = vmatpush1.msra.mxu0 0.0
  %108 = vmatprep.subr.mxu0 0.0
  %109 = vmatpush1.msra.mxu0 0.0
  %110 = vmatprep.subr.mxu0 0.0
  %111 = vmatpush1.msra.mxu0 0.0
  %112 = vmatprep.subr.mxu0 0.0
  %113 = vmatpush1.msra.mxu0 0.0
  %114 = vmatprep.subr.mxu0 0.0
  %115 = vmatpush1.msra.mxu0 0.0
  %116 = vmatprep.subr.mxu0 0.0
  %117 = vmatpush1.msra.mxu0 0.0
  %118 = vmatprep.subr.mxu0 0.0
  %119 = vmatpush1.msra.mxu0 0.0
  %120 = vmatprep.subr.mxu0 0.0
  %121 = vmatpush1.msra.mxu0 0.0
  %122 = vmatprep.subr.mxu0 0.0
  %123 = vmatpush1.msra.mxu0 0.0
  %124 = vmatprep.subr.mxu0 0.0
  %125 = vmatpush1.msra.mxu0 %v95
  %126 = vmatprep.subr.mxu0 0.0
  %127 = vmatpush1.msra.mxu0 %v94
  %128 = vmatprep.subr.mxu0 0.0
  %129 = vmatpush1.msra.mxu0 %v93
  %130 = vmatprep.subr.mxu0 0.0
  %131 = vmatpush1.msra.mxu0 %v92
  %132 = vmatprep.subr.mxu0 0.0
  %133 = vmatpush2.msra.mxu0 0.0
  %134 = vmatprep.subr.mxu0 0.0
  %135 = vmatpush2.msra.mxu0 0.0
  %136 = vmatprep.subr.mxu0 0.0
  %137 = vmatpush2.msra.mxu0 0.0
  %138 = vmatprep.subr.mxu0 0.0
  %139 = vmatpush2.msra.mxu0 0.0
  %140 = vmatprep.subr.mxu0 0.0
  %141 = vmatpush2.msra.mxu0 0.0
  %142 = vmatprep.subr.mxu0 0.0
  %143 = vmatpush2.msra.mxu0 0.0
  %144 = vmatprep.subr.mxu0 0.0
  %145 = vmatpush2.msra.mxu0 0.0
  %146 = vmatprep.subr.mxu0 0.0
  %147 = vmatpush2.msra.mxu0 0.0
  %148 = vmatprep.subr.mxu0 0.0
  %149 = vmatpush2.msra.mxu0 0.0
  %150 = vmatprep.subr.mxu0 0.0
  %151 = vmatpush2.msra.mxu0 0.0
  %152 = vmatprep.subr.mxu0 0.0
  %153 = vmatpush2.msra.mxu0 0.0
  %154 = vmatprep.subr.mxu0 0.0
  %155 = vmatpush2.msra.mxu0 0.0
  %156 = vmatprep.subr.mxu0 0.0
  %157 = vmatpush2.msra.mxu0 0.0
  %158 = vmatprep.subr.mxu0 0.0
  %159 = vmatpush2.msra.mxu0 0.0
  %160 = vmatprep.subr.mxu0 0.0
  %161 = vmatpush2.msra.mxu0 0.0
  %162 = vmatprep.subr.mxu0 0.0
  %163 = vmatpush2.msra.mxu0 0.0
  %164 = vmatprep.mubr.f32.mxu0 0.0
  %165 = vmatmul.mubr.f32.gmra.mxu0 %v98
  %v166 = vpop.f32.mrf.mxu0
  %v167 = vadd.f32 0.0, %v166
  %v168 = vpop.f32.mrf.mxu0
  %169 = vdwg.mxu0
  %vm170 = vcmask 31744
  %v171 = vsel %vm170, %v167, -inf
  %172 = vmax.xlane.f32.xlu0 %v171
  %v173 = vpop.xlane.xlu0 %172
  %v174 = vsub.f32 %v167, %v173
  %v175 = vmul.f32 %v174, 1.442695
  %v176 = vpow.pop %v175
  %v177 = vsel %vm170, %v176, 0.0
  %178 = vadd.xlane.f32.xlu0 %v177
  %v179 = vpop.xlane.xlu0 %178
  %v180 = vrcp.pop %v179
  %v181 = vmul.f32 %v176, %v180
  %182 = vst.msk [vmem:[%s3] sm:$0xff] %vm170, %v181
  // Predicated region
  $region14: #{tpu_custom_call.1} parent=0 // pred_check
    _
  $region15: #{tpu_custom_call.1} parent=0 // pred_check_branch
    %184 = sbr.rel (0) target = $region17
  $region16: #{tpu_custom_call.1} parent=0 // pred_region
    _
  $region17: #{tpu_custom_call.1} parent=0 // pred_fallthru
    _
  // Predicated region
  $region18: #{tpu_custom_call.1} parent=0 // pred_check
    _
  $region19: #{tpu_custom_call.1} parent=0 // pred_check_branch
    %186 = sbr.rel (0) target = $region21
  $region20: #{tpu_custom_call.1} parent=0 // pred_region
    _
  $region21: #{tpu_custom_call.1} parent=0 // pred_fallthru
    _

</llo_original>
